<compile_context>
chip_gen: v6e
topology: v6e:2x2x1
jax: 0.10.0
libtpu: 0.0.40
codegen_flags: <defaults>
</compile_context>

<pallas_src>
import functools

import jax
import jax.numpy as jnp
from jax.experimental import pallas as pl
from jax.experimental.pallas import tpu as pltpu

_LANES = 128
_PAD_LOGIT = -1e4   # sigmoid(_PAD_LOGIT) == 0.0 exactly in f32 (tanh saturates)


def _dice_partial_kernel(x_ref, t_ref, inter_ref, denom_ref,
                         inter_acc, xs_acc, ts_acc,
                         *, rows_per_tile, chunk_rows, acc_rows):
    ri = pl.program_id(2)
    nr = pl.num_programs(2)
    c = x_ref.shape[0]

    # Reset the (tiny) per-(sample, row-chunk) accumulators on the first tile.
    @pl.when(ri == 0)
    def _():
        inter_acc[...] = jnp.zeros_like(inter_acc)
        xs_acc[...] = jnp.zeros_like(xs_acc)
        ts_acc[...] = jnp.zeros_like(ts_acc)

    num_chunks = rows_per_tile // chunk_rows

    # Walk the big DMA tile in small compute chunks: keeps vector intermediates
    # bounded while the per-step pipeline overhead is amortized over a ~4 MiB
    # tile.  Each chunk is folded to (C, acc_rows, 128) with pure VALU adds
    # before touching the scratch accumulators (no full-tile RMW).
    @pl.loop(0, num_chunks)
    def _(f):
        off = pl.multiple_of(f * chunk_rows, chunk_rows)
        xf = x_ref[:, pl.ds(off, chunk_rows), :].astype(jnp.float32)  # (C, CR, 128)
        tf = t_ref[pl.ds(off, chunk_rows), :].astype(jnp.float32)     # (CR, 128)
        # sigmoid(x) with a single EUP transcendental.
        sx = 0.5 * jnp.tanh(0.5 * xf) + 0.5
        prod = sx * tf[None, :, :]
        if chunk_rows == acc_rows:
            inter_acc[...] += prod
            xs_acc[...] += sx
            ts_acc[...] += tf                      # target sum accumulated once
        else:
            sub = chunk_rows // acc_rows
            inter_acc[...] += prod.reshape(c, sub, acc_rows, _LANES).sum(axis=1)
            xs_acc[...] += sx.reshape(c, sub, acc_rows, _LANES).sum(axis=1)
            ts_acc[...] += tf.reshape(sub, acc_rows, _LANES).sum(axis=0)

    # Finalize this (sample, row-chunk) partial: one sublane reduction, output
    # stays lane-dense (C, 128).
    @pl.when(ri == nr - 1)
    def _():
        ts_rows = jnp.sum(ts_acc[...], axis=0)                         # (128,)
        inter_ref[...] = jnp.sum(inter_acc[...], axis=1)               # (C, 128)
        denom_ref[...] = jnp.sum(xs_acc[...], axis=1) + ts_rows[None, :]


def dice_loss_multiclass(inputs, targets, num_classes, smooth=1.0,
                         target_tile_bytes=4 << 20):
    """inputs: (N, C, H, W) logits; targets: (N, 1, H*W). Returns scalar loss."""
    n, c, h, w = inputs.shape
    assert c == num_classes
    hw = h * w
    tn, tc, tpix = targets.shape
    assert tn == n and tpix == hw

    in_bytes = jnp.dtype(inputs.dtype).itemsize

    # --- Row tiling: rows of 128 lanes per sample. ---
    r0 = pl.cdiv(hw, _LANES)
    desired = max(8, (target_tile_bytes // (c * _LANES * in_bytes)) // 8 * 8)
    if desired >= r0:
        tr = r0                                     # whole sample: full-extent tile
        n_tiles = 1
    else:
        n_tiles = pl.cdiv(r0, desired)
        tr = pl.cdiv(pl.cdiv(r0, n_tiles), 8) * 8   # multiple of 8, <= desired
    r_pad = n_tiles * tr
    hw_pad = r_pad * _LANES

    # Free contiguous reshapes (no HBM transpose).  Pad only when required
    # (ragged HW or tile alignment, <~1% rows): logits pad with -1e4 so the
    # tanh-sigmoid is exactly 0, targets pad with 0 -> no in-kernel masking.
    x = inputs.reshape(n, c, hw)
    t = targets.reshape(n, hw) if tc == 1 else targets[:, 0, :]
    if hw_pad != hw:
        x = jnp.pad(x, ((0, 0), (0, 0), (0, hw_pad - hw)),
                    constant_values=_PAD_LOGIT)
        t = jnp.pad(t, ((0, 0), (0, hw_pad - hw)))
    x4 = x.reshape(n, c, r_pad, _LANES)
    t3 = t.reshape(n, r_pad, _LANES)

    # Compute-chunk / accumulator sizing.
    if tr % 8 == 0:
        acc_rows = 8
        chunk_rows = next(d for d in (128, 64, 32, 16, 8) if tr % d == 0)
    else:
        acc_rows = tr          # tiny single-tile sample (tr == full extent)
        chunk_rows = tr

    # Extra parallel row-chunk axis so small batches still use both v7x cores.
    if n < 4 and n_tiles >= 2 and n_tiles % 2 == 0:
        n_row_chunks = 2
    else:
        n_row_chunks = 1
    tiles_per_chunk = n_tiles // n_row_chunks

    grid = (n, n_row_chunks, tiles_per_chunk)

    kernel = functools.partial(_dice_partial_kernel,
                               rows_per_tile=tr,
                               chunk_rows=chunk_rows,
                               acc_rows=acc_rows)

    inter_p, denom_p = pl.pallas_call(
        kernel,
        out_shape=(
            jax.ShapeDtypeStruct((n, n_row_chunks, c, _LANES), jnp.float32),
            jax.ShapeDtypeStruct((n, n_row_chunks, c, _LANES), jnp.float32),
        ),
        grid_spec=pltpu.PrefetchScalarGridSpec(
            num_scalar_prefetch=0,
            grid=grid,
            in_specs=[
                # logits tile: all classes in the block, lane/sublane dense
                pl.BlockSpec(
                    (None, c, tr, _LANES),
                    lambda ni, ci, ri: (ni, 0, ci * tiles_per_chunk + ri, 0)),
                # shared targets tile: DMA'd once per pixel tile, reused by all classes
                pl.BlockSpec(
                    (None, tr, _LANES),
                    lambda ni, ci, ri: (ni, ci * tiles_per_chunk + ri, 0)),
            ],
            out_specs=[
                pl.BlockSpec((None, None, c, _LANES),
                             lambda ni, ci, ri: (ni, ci, 0, 0)),
                pl.BlockSpec((None, None, c, _LANES),
                             lambda ni, ci, ri: (ni, ci, 0, 0)),
            ],
            scratch_shapes=[
                pltpu.VMEM((c, acc_rows, _LANES), jnp.float32),  # intersection partials
                pltpu.VMEM((c, acc_rows, _LANES), jnp.float32),  # sigmoid(x) partials
                pltpu.VMEM((acc_rows, _LANES), jnp.float32),     # target partials
            ],
        ),
        compiler_params=pltpu.CompilerParams(
            dimension_semantics=("parallel", "parallel", "arbitrary"),
            vmem_limit_bytes=48 * 1024 * 1024),
    )(x4, t3)

    # Tiny final reduction + dice ratio + mean over classes in the wrapper.
    inter = jnp.sum(inter_p, axis=(0, 1, 3))       # (C,)
    denom = jnp.sum(denom_p, axis=(0, 1, 3))       # (C,)
    smooth = jnp.float32(smooth)
    dice = (2.0 * inter + smooth) / (denom + smooth)
    return jnp.mean(1.0 - dice)


def dice_loss_multiclass_ref(inputs, targets, num_classes, smooth=1.0):
    """Pure-JAX reference mirroring the PyTorch module."""
    t = targets[:, 0, :].reshape(-1).astype(jnp.float32)
    total = jnp.float32(0.0)
    for i in range(num_classes):
        x = jax.nn.sigmoid(inputs[:, i, :, :].astype(jnp.float32)).reshape(-1)
        inter = jnp.sum(x * t)
        dice = (2.0 * inter + smooth) / (jnp.sum(x) + jnp.sum(t) + smooth)
        total = total + (1.0 - dice)
    return total / num_classes


if __name__ == "__main__":
    key = jax.random.PRNGKey(0)

    # (N, C, H, W, target_tile_bytes):
    #  1) lane-aligned, whole sample in one tile
    #  2) ragged spatial size (pad path, sigmoid(pad) == 0)
    #  3) multi-tile + row-chunk parallel axis + chunk fold-reduce
    #  4) ragged + multi-tile accumulation across grid steps
    cases = [
        (2, 4, 16, 16, 4 << 20),
        (2, 3, 10, 10, 4 << 20),
        (2, 4, 128, 128, 64 << 10),
        (1, 3, 50, 50, 16 << 10),
    ]
    for (N, C, H, W, ttb) in cases:
        key, k1, k2 = jax.random.split(key, 3)
        inputs = jax.random.normal(k1, (N, C, H, W), dtype=jnp.float32)
        targets = jax.random.bernoulli(k2, 0.5, (N, 1, H * W)).astype(jnp.float32)

        loss = jax.block_until_ready(
            dice_loss_multiclass(inputs, targets, C, target_tile_bytes=ttb))
        loss_ref = jax.block_until_ready(
            dice_loss_multiclass_ref(inputs, targets, C))

        if not jnp.allclose(loss, loss_ref, rtol=1e-5, atol=1e-5):
            raise AssertionError(
                f"mismatch at {(N, C, H, W)}: kernel={loss} ref={loss_ref}")

    # TODO(synk): the PyTorch module's per-class print() debug statements are
    # intentionally not reproduced (no side-effecting prints in the kernel).
    print("KERNEL_OK")
</pallas_src>

<mosaic_0001>
module attributes {stable_mosaic.version = 11 : i64} {
  func.func @_dice_partial_kernel(%arg0: i32, %arg1: i32, %arg2: i32, %arg3: memref<1x4x2x128xf32, #tpu.memory_space<vmem>>, %arg4: memref<1x2x128xf32, #tpu.memory_space<vmem>>, %arg5: memref<1x1x4x128xf32, #tpu.memory_space<vmem>>, %arg6: memref<1x1x4x128xf32, #tpu.memory_space<vmem>>, %arg7: memref<4x2x128xf32, #tpu.memory_space<vmem>>, %arg8: memref<4x2x128xf32, #tpu.memory_space<vmem>>, %arg9: memref<2x128xf32, #tpu.memory_space<vmem>>) attributes {dimension_semantics = [#tpu.dimension_semantics<parallel>, #tpu.dimension_semantics<parallel>, #tpu.dimension_semantics<arbitrary>], iteration_bounds = array<i64: 2, 1, 1>, scalar_prefetch = 0 : i64, scratch_operands = 3 : i64, tpu.core_type = #tpu.core_type<tc>, window_params = [{transform_indices = @transform_0, window_bounds = array<i64: 1, 4, 2, 128>}, {transform_indices = @transform_1, window_bounds = array<i64: 1, 2, 128>}, {transform_indices = @transform_2, window_bounds = array<i64: 1, 1, 4, 128>}, {transform_indices = @transform_3, window_bounds = array<i64: 1, 1, 4, 128>}]} {
    %c0_i32 = arith.constant 0 : i32
    %0 = arith.cmpi eq, %arg2, %c0_i32 : i32
    %1 = arith.extui %0 : i1 to i32
    %c0_i32_0 = arith.constant 0 : i32
    %2 = arith.cmpi ne, %1, %c0_i32_0 : i32
    scf.if %2 {
      %cst_28 = arith.constant 0.000000e+00 : f32
      %35 = vector.broadcast %cst_28 : f32 to vector<4x2x128xf32>
      %c0_29 = arith.constant 0 : index
      %c0_30 = arith.constant 0 : index
      %c0_31 = arith.constant 0 : index
      %36 = vector.load %arg7[%c0_29, %c0_30, %c0_31] : memref<4x2x128xf32, #tpu.memory_space<vmem>>, vector<4x2x128xf32>
      tpu.vector_store %arg7[%c0_29, %c0_30, %c0_31], %35 {strides = array<i32>} : memref<4x2x128xf32, #tpu.memory_space<vmem>>, vector<4x2x128xf32>,
      %cst_32 = arith.constant 0.000000e+00 : f32
      %37 = vector.broadcast %cst_32 : f32 to vector<4x2x128xf32>
      %c0_33 = arith.constant 0 : index
      %c0_34 = arith.constant 0 : index
      %c0_35 = arith.constant 0 : index
      %38 = vector.load %arg8[%c0_33, %c0_34, %c0_35] : memref<4x2x128xf32, #tpu.memory_space<vmem>>, vector<4x2x128xf32>
      tpu.vector_store %arg8[%c0_33, %c0_34, %c0_35], %37 {strides = array<i32>} : memref<4x2x128xf32, #tpu.memory_space<vmem>>, vector<4x2x128xf32>,
      %cst_36 = arith.constant 0.000000e+00 : f32
      %39 = vector.broadcast %cst_36 : f32 to vector<2x128xf32>
      %c0_37 = arith.constant 0 : index
      %c0_38 = arith.constant 0 : index
      %40 = vector.load %arg9[%c0_37, %c0_38] : memref<2x128xf32, #tpu.memory_space<vmem>>, vector<2x128xf32>
      tpu.vector_store %arg9[%c0_37, %c0_38], %39 {strides = array<i32>} : memref<2x128xf32, #tpu.memory_space<vmem>>, vector<2x128xf32>,
    } else {
    }
    %c0_i32_1 = arith.constant 0 : i32
    %c1_i32 = arith.constant 1 : i32
    %3 = arith.muli %c0_i32_1, %c1_i32 : i32
    %c0_i32_2 = arith.constant 0 : i32
    %4 = arith.addi %c0_i32_2, %3 : i32
    %c2_i32 = arith.constant 2 : i32
    %5 = arith.muli %4, %c2_i32 : i32
    %6 = tpu.assume_multiple %5, 2 : i32
    %c0 = arith.constant 0 : index
    %c0_3 = arith.constant 0 : index
    %7 = arith.index_cast %6 : i32 to index
    %c0_4 = arith.constant 0 : index
    %8 = vector.load %arg3[%c0, %c0_3, %7, %c0_4] : memref<1x4x2x128xf32, #tpu.memory_space<vmem>>, vector<1x4x2x128xf32>
    %9 = vector.shape_cast %8 : vector<1x4x2x128xf32> to vector<4x2x128xf32>
    %c0_5 = arith.constant 0 : index
    %10 = arith.index_cast %6 : i32 to index
    %c0_6 = arith.constant 0 : index
    %11 = vector.load %arg4[%c0_5, %10, %c0_6] : memref<1x2x128xf32, #tpu.memory_space<vmem>>, vector<1x2x128xf32>
    %12 = vector.shape_cast %11 : vector<1x2x128xf32> to vector<2x128xf32>
    %cst = arith.constant 5.000000e-01 : f32
    %13 = vector.broadcast %cst : f32 to vector<4x2x128xf32>
    %14 = arith.mulf %13, %9 : vector<4x2x128xf32>
    %15 = math.tanh %14 : vector<4x2x128xf32>
    %cst_7 = arith.constant 5.000000e-01 : f32
    %16 = vector.broadcast %cst_7 : f32 to vector<4x2x128xf32>
    %17 = arith.mulf %16, %15 : vector<4x2x128xf32>
    %cst_8 = arith.constant 5.000000e-01 : f32
    %18 = vector.broadcast %cst_8 : f32 to vector<4x2x128xf32>
    %19 = arith.addf %17, %18 : vector<4x2x128xf32>
    %20 = vector.shape_cast %12 : vector<2x128xf32> to vector<1x2x128xf32>
    %21 = vector.broadcast %20 : vector<1x2x128xf32> to vector<4x2x128xf32>
    %22 = arith.mulf %19, %21 : vector<4x2x128xf32>
    %c0_9 = arith.constant 0 : index
    %c0_10 = arith.constant 0 : index
    %c0_11 = arith.constant 0 : index
    %23 = vector.load %arg7[%c0_9, %c0_10, %c0_11] : memref<4x2x128xf32, #tpu.memory_space<vmem>>, vector<4x2x128xf32>
    %24 = arith.addf %23, %22 : vector<4x2x128xf32>
    %c0_12 = arith.constant 0 : index
    %c0_13 = arith.constant 0 : index
    %c0_14 = arith.constant 0 : index
    %25 = vector.load %arg7[%c0_12, %c0_13, %c0_14] : memref<4x2x128xf32, #tpu.memory_space<vmem>>, vector<4x2x128xf32>
    tpu.vector_store %arg7[%c0_12, %c0_13, %c0_14], %24 {strides = array<i32>} : memref<4x2x128xf32, #tpu.memory_space<vmem>>, vector<4x2x128xf32>,
    %c0_15 = arith.constant 0 : index
    %c0_16 = arith.constant 0 : index
    %c0_17 = arith.constant 0 : index
    %26 = vector.load %arg8[%c0_15, %c0_16, %c0_17] : memref<4x2x128xf32, #tpu.memory_space<vmem>>, vector<4x2x128xf32>
    %27 = arith.addf %26, %19 : vector<4x2x128xf32>
    %c0_18 = arith.constant 0 : index
    %c0_19 = arith.constant 0 : index
    %c0_20 = arith.constant 0 : index
    %28 = vector.load %arg8[%c0_18, %c0_19, %c0_20] : memref<4x2x128xf32, #tpu.memory_space<vmem>>, vector<4x2x128xf32>
    tpu.vector_store %arg8[%c0_18, %c0_19, %c0_20], %27 {strides = array<i32>} : memref<4x2x128xf32, #tpu.memory_space<vmem>>, vector<4x2x128xf32>,
    %c0_21 = arith.constant 0 : index
    %c0_22 = arith.constant 0 : index
    %29 = vector.load %arg9[%c0_21, %c0_22] : memref<2x128xf32, #tpu.memory_space<vmem>>, vector<2x128xf32>
    %30 = arith.addf %29, %12 : vector<2x128xf32>
    %c0_23 = arith.constant 0 : index
    %c0_24 = arith.constant 0 : index
    %31 = vector.load %arg9[%c0_23, %c0_24] : memref<2x128xf32, #tpu.memory_space<vmem>>, vector<2x128xf32>
    tpu.vector_store %arg9[%c0_23, %c0_24], %30 {strides = array<i32>} : memref<2x128xf32, #tpu.memory_space<vmem>>, vector<2x128xf32>,
    %c1_i32_25 = arith.constant 1 : i32
    %c0_i32_26 = arith.constant 0 : i32
    %32 = arith.cmpi eq, %arg2, %c0_i32_26 : i32
    %33 = arith.extui %32 : i1 to i32
    %c0_i32_27 = arith.constant 0 : i32
    %34 = arith.cmpi ne, %33, %c0_i32_27 : i32
    scf.if %34 {
      %c0_28 = arith.constant 0 : index
      %c0_29 = arith.constant 0 : index
      %35 = vector.load %arg9[%c0_28, %c0_29] : memref<2x128xf32, #tpu.memory_space<vmem>>, vector<2x128xf32>
      %cst_30 = arith.constant dense<0.000000e+00> : vector<128xf32>
      %36 = vector.multi_reduction <add>, %35, %cst_30 [0] : vector<2x128xf32> to vector<128xf32>
      %c0_31 = arith.constant 0 : index
      %c0_32 = arith.constant 0 : index
      %c0_33 = arith.constant 0 : index
      %37 = vector.load %arg7[%c0_31, %c0_32, %c0_33] : memref<4x2x128xf32, #tpu.memory_space<vmem>>, vector<4x2x128xf32>
      %cst_34 = arith.constant dense<0.000000e+00> : vector<4x128xf32>
      %38 = vector.multi_reduction <add>, %37, %cst_34 [1] : vector<4x2x128xf32> to vector<4x128xf32>
      %c0_35 = arith.constant 0 : index
      %c0_36 = arith.constant 0 : index
      %c0_37 = arith.constant 0 : index
      %c0_38 = arith.constant 0 : index
      %39 = vector.load %arg5[%c0_35, %c0_36, %c0_37, %c0_38] : memref<1x1x4x128xf32, #tpu.memory_space<vmem>>, vector<1x1x4x128xf32>
      %40 = vector.shape_cast %39 : vector<1x1x4x128xf32> to vector<4x128xf32>
      %41 = vector.shape_cast %38 : vector<4x128xf32> to vector<1x1x4x128xf32>
      tpu.vector_store %arg5[%c0_35, %c0_36, %c0_37, %c0_38], %41 {strides = array<i32>} : memref<1x1x4x128xf32, #tpu.memory_space<vmem>>, vector<1x1x4x128xf32>,
      %c0_39 = arith.constant 0 : index
      %c0_40 = arith.constant 0 : index
      %c0_41 = arith.constant 0 : index
      %42 = vector.load %arg8[%c0_39, %c0_40, %c0_41] : memref<4x2x128xf32, #tpu.memory_space<vmem>>, vector<4x2x128xf32>
      %cst_42 = arith.constant dense<0.000000e+00> : vector<4x128xf32>
      %43 = vector.multi_reduction <add>, %42, %cst_42 [1] : vector<4x2x128xf32> to vector<4x128xf32>
      %44 = vector.shape_cast %36 : vector<128xf32> to vector<1x128xf32>
      %45 = vector.broadcast %44 : vector<1x128xf32> to vector<4x128xf32>
      %46 = arith.addf %43, %45 : vector<4x128xf32>
      %c0_43 = arith.constant 0 : index
      %c0_44 = arith.constant 0 : index
      %c0_45 = arith.constant 0 : index
      %c0_46 = arith.constant 0 : index
      %47 = vector.load %arg6[%c0_43, %c0_44, %c0_45, %c0_46] : memref<1x1x4x128xf32, #tpu.memory_space<vmem>>, vector<1x1x4x128xf32>
      %48 = vector.shape_cast %47 : vector<1x1x4x128xf32> to vector<4x128xf32>
      %49 = vector.shape_cast %46 : vector<4x128xf32> to vector<1x1x4x128xf32>
      tpu.vector_store %arg6[%c0_43, %c0_44, %c0_45, %c0_46], %49 {strides = array<i32>} : memref<1x1x4x128xf32, #tpu.memory_space<vmem>>, vector<1x1x4x128xf32>,
    } else {
    }
    return
  }
  func.func @transform_0(%arg0: i32, %arg1: i32, %arg2: i32) -> (i32, i32, i32, i32) {
    %c1_i32 = arith.constant 1 : i32
    %0 = arith.muli %arg1, %c1_i32 : i32
    %1 = arith.addi %0, %arg2 : i32
    %c0_i32 = arith.constant 0 : i32
    %c0_i32_0 = arith.constant 0 : i32
    %c0_i32_1 = arith.constant 0 : i32
    return %arg0, %c0_i32, %1, %c0_i32_0 : i32, i32, i32, i32
  }
  func.func @transform_1(%arg0: i32, %arg1: i32, %arg2: i32) -> (i32, i32, i32) {
    %c1_i32 = arith.constant 1 : i32
    %0 = arith.muli %arg1, %c1_i32 : i32
    %1 = arith.addi %0, %arg2 : i32
    %c0_i32 = arith.constant 0 : i32
    %c0_i32_0 = arith.constant 0 : i32
    return %arg0, %1, %c0_i32 : i32, i32, i32
  }
  func.func @transform_2(%arg0: i32, %arg1: i32, %arg2: i32) -> (i32, i32, i32, i32) {
    %c0_i32 = arith.constant 0 : i32
    %c0_i32_0 = arith.constant 0 : i32
    %c0_i32_1 = arith.constant 0 : i32
    return %arg0, %arg1, %c0_i32, %c0_i32_0 : i32, i32, i32, i32
  }
  func.func @transform_3(%arg0: i32, %arg1: i32, %arg2: i32) -> (i32, i32, i32, i32) {
    %c0_i32 = arith.constant 0 : i32
    %c0_i32_0 = arith.constant 0 : i32
    %c0_i32_1 = arith.constant 0 : i32
    return %arg0, %arg1, %c0_i32, %c0_i32_0 : i32, i32, i32, i32
  }
}

</mosaic_0001>

<llo_original>
// kernel: tpu_custom_call.1
$region0: #{tpu_custom_call.1}
  #allocation0 [shape = 'u32[]', space=smem, size = 0x4, offset = 0x4, fixed_abs, tag = 'smem constant byte address 0x4 - core index']
  #allocation1 [shape = 'u32[144,128]{1,0:T(1,128)}', space=vmem, size = 0x12000, scoped, tag = 'internal scratch']
  #allocation2 [shape = 'f32[4,2,128]{2,1,0:T(2,128)}', space=vmem, size = 0x1000, scoped, tag = 'scratch operand']
  #allocation3 [shape = 'f32[4,2,128]{2,1,0:T(2,128)}', space=vmem, size = 0x1000, scoped, tag = 'scratch operand']
  #allocation4 [shape = 'f32[2,128]{1,0:T(2,128)}', space=vmem, size = 0x400, scoped, tag = 'scratch operand']
  %s0 = inlined_call_operand.hbm [shape: f32[2,4,2,128], index: 0, kind: input, shape index: {}]
  %s1 = inlined_call_operand.hbm [shape: f32[2,2,128], index: 1, kind: input, shape index: {}]
  %s2 = inlined_call_operand.hbm [shape: f32[2,1,4,128], index: 2, kind: output, shape index: {0}]
  %s3 = inlined_call_operand.hbm [shape: f32[2,1,4,128], index: 3, kind: output, shape index: {1}]
  %4 = xla_tuple %s2, %s3
  %s5 = sld [smem:[#allocation0]]
  $region65: #{tpu_custom_call.1} parent=0
    _
  %s7 = ssub.s32 1, %s5
  %s8 = scalar_select 0, %s7, %s5
  $region1: #{tpu_custom_call.1} parent=0
    #allocation5 [shape = 'u8[8192]{0}', space=vmem, size = 0x2000, scoped, tag = 'input window, operand 0']
    #allocation6 [shape = 's32[2]{0}', space=sflag, size = 0x8, scoped, tag = 'scoped memory for tpu_custom_call.1']
    #allocation7 [shape = 's32[2]{0}', space=sflag, size = 0x8, scoped, tag = 'scoped memory for tpu_custom_call.1']
    #allocation8 [shape = 'u8[2048]{0}', space=vmem, size = 0x800, scoped, tag = 'input window, operand 1']
    #allocation9 [shape = 's32[2]{0}', space=sflag, size = 0x8, scoped, tag = 'scoped memory for tpu_custom_call.1']
    #allocation10 [shape = 'u8[4096]{0}', space=vmem, size = 0x1000, scoped, tag = 'output window, operand 0']
    #allocation11 [shape = 'u8[4096]{0}', space=vmem, size = 0x1000, scoped, tag = 'output window, operand 1']
    #allocation12 [shape = 's32[2]{0}', space=sflag, size = 0x8, scoped, tag = 'scoped memory for tpu_custom_call.1']
    %9 = vsyncpa [#allocation6], 0
    %s10 = scalar_lea.sflag [#allocation6], 1
    %11 = vsyncpa %s10, 0
    %12 = vsyncpa [#allocation9], 0
    %s13 = scalar_lea.sflag [#allocation9], 1
    %14 = vsyncpa %s13, 0
    %15 = vsyncpa [#allocation7], 0
    %s16 = scalar_lea.sflag [#allocation7], 1
    %17 = vsyncpa %s16, 0
    %18 = vsyncpa [#allocation12], 0
    %s19 = scalar_lea.sflag [#allocation12], 1
    %20 = vsyncpa %s19, 0
    loop: start=0, step=1, limit=4
    $region2: #{tpu_custom_call.1} parent=1 // loop_pre_header
      _
    $region3: #{tpu_custom_call.1} parent=1 // loop_header
      %s22 = sphi 0, %s26
      %p23 = scmp.ge.s32.totalorder %s22, 4
      %s29 = sphi 0, %s48
      %s30 = sphi 0, %s44
      %s31 = sphi 0, %s40
      %s32 = sphi 0, %s29
      %s33 = sphi 0, %s30
      %s34 = sphi 0, %s31
      %s35 = sphi 0, %s32
      %s36 = sphi 0, %s33
      %s37 = sphi 0, %s34
      %s55 = sphi 0, %s57
      %s58 = sphi 0, %s55
      %s59 = sphi 0, %s58
      %s75 = sphi 0, %s59
      %s85 = sphi 0, %s87
      %s88 = sphi 0, %s85
      %s89 = sphi 0, %s88
      %s105 = sphi 0, %s89
      %s113 = sphi 0, %s115
      %s116 = sphi 0, %s113
      %s117 = sphi 0, %s116
      %s133 = sphi 0, %s117
      %s141 = sphi 0, %s143
      %s144 = sphi 0, %s141
      %s145 = sphi 0, %s144
      %s161 = sphi 0, %s145
    $region4: #{tpu_custom_call.1} parent=1 // loop_header_branch
      %25 = sbr.rel (%p23) target = $region8
    $region5: #{tpu_custom_call.1} parent=1 // loop_body
      %s27 = ssub.s32 %s22, 1
      %s28 = ssub.s32 %s22, 2
      %s38 = sadd.s32 1, %s31
      %p39 = scmp.ge.s32.totalorder %s38, 1
      %s40 = scalar_select %p39, 0, %s38
      %s41 = sadd.s32 1, %s30
      %s42 = scalar_select %p39, %s41, %s30
      %p43 = scmp.ge.s32.totalorder %s42, 1
      %s44 = scalar_select %p43, 0, %s42
      %s45 = sadd.s32 1, %s29
      %s46 = scalar_select %p43, %s45, %s29
      %p47 = scmp.ge.s32.totalorder %s46, 2
      %s48 = scalar_select %p47, 0, %s46
      %s49 = sadd.s32 %s30, %s31
      %s50 = sadd.s32 %s44, %s40
      %s51 = ssub.s32 %s29, %s48
      %s52 = ssub.s32 %s49, %s50
      %s53 = sor.u32 %s51, %s52
      %p54 = scmp.eq.s32.totalorder %s53, 0
      %s56 = sadd.s32 %s55, 1
      %s57 = scalar_select %p54, %s55, %s56
      %p60 = pneg %p54
      %p61 = scmp.eq.s32.totalorder %s22, 1
      %p62 = por %p60, %p61
      %p63 = scmp.ne.s32.totalorder %s55, %s58
      %p64 = scmp.eq.s32.totalorder %s22, 0
      %p65 = por %p63, %p64
      %p66 = scmp.ne.s32.totalorder %s55, %s58
      %p67 = scmp.eq.s32.totalorder %s27, 1
      %p68 = por %p66, %p67
      %p69 = scmp.ne.s32.totalorder %s58, %s59
      %p70 = scmp.eq.s32.totalorder %s27, 0
      %p71 = por %p69, %p70
      %p72 = scmp.ne.s32.totalorder %s58, %s59
      %p73 = scmp.eq.s32.totalorder %s28, 1
      %p74 = por %p72, %p73
      %p76 = scmp.ne.s32.totalorder %s59, %s75
      %p77 = scmp.eq.s32.totalorder %s28, 0
      %p78 = por %p76, %p77
      %s79 = sadd.s32 %s30, %s31
      %s80 = sadd.s32 %s44, %s40
      %s81 = ssub.s32 %s29, %s48
      %s82 = ssub.s32 %s79, %s80
      %s83 = sor.u32 %s81, %s82
      %p84 = scmp.eq.s32.totalorder %s83, 0
      %s86 = sadd.s32 %s85, 1
      %s87 = scalar_select %p84, %s85, %s86
      %p90 = pneg %p84
      %p91 = scmp.eq.s32.totalorder %s22, 1
      %p92 = por %p90, %p91
      %p93 = scmp.ne.s32.totalorder %s85, %s88
      %p94 = scmp.eq.s32.totalorder %s22, 0
      %p95 = por %p93, %p94
      %p96 = scmp.ne.s32.totalorder %s85, %s88
      %p97 = scmp.eq.s32.totalorder %s27, 1
      %p98 = por %p96, %p97
      %p99 = scmp.ne.s32.totalorder %s88, %s89
      %p100 = scmp.eq.s32.totalorder %s27, 0
      %p101 = por %p99, %p100
      %p102 = scmp.ne.s32.totalorder %s88, %s89
      %p103 = scmp.eq.s32.totalorder %s28, 1
      %p104 = por %p102, %p103
      %p106 = scmp.ne.s32.totalorder %s89, %s105
      %p107 = scmp.eq.s32.totalorder %s28, 0
      %p108 = por %p106, %p107
      %s109 = ssub.s32 %s29, %s48
      %s110 = ssub.s32 %s30, %s44
      %s111 = sor.u32 %s109, %s110
      %p112 = scmp.eq.s32.totalorder %s111, 0
      %s114 = sadd.s32 %s113, 1
      %s115 = scalar_select %p112, %s113, %s114
      %p118 = pneg %p112
      %p119 = scmp.eq.s32.totalorder %s22, 1
      %p120 = por %p118, %p119
      %p121 = scmp.ne.s32.totalorder %s113, %s116
      %p122 = scmp.eq.s32.totalorder %s22, 0
      %p123 = por %p121, %p122
      %p124 = scmp.ne.s32.totalorder %s113, %s116
      %p125 = scmp.eq.s32.totalorder %s27, 1
      %p126 = por %p124, %p125
      %p127 = scmp.ne.s32.totalorder %s116, %s117
      %p128 = scmp.eq.s32.totalorder %s27, 0
      %p129 = por %p127, %p128
      %p130 = scmp.ne.s32.totalorder %s116, %s117
      %p131 = scmp.eq.s32.totalorder %s28, 1
      %p132 = por %p130, %p131
      %p134 = scmp.ne.s32.totalorder %s117, %s133
      %p135 = scmp.eq.s32.totalorder %s28, 0
      %p136 = por %p134, %p135
      %s137 = ssub.s32 %s29, %s48
      %s138 = ssub.s32 %s30, %s44
      %s139 = sor.u32 %s137, %s138
      %p140 = scmp.eq.s32.totalorder %s139, 0
      %s142 = sadd.s32 %s141, 1
      %s143 = scalar_select %p140, %s141, %s142
      %p146 = pneg %p140
      %p147 = scmp.eq.s32.totalorder %s22, 1
      %p148 = por %p146, %p147
      %p149 = scmp.ne.s32.totalorder %s141, %s144
      %p150 = scmp.eq.s32.totalorder %s22, 0
      %p151 = por %p149, %p150
      %p152 = scmp.ne.s32.totalorder %s141, %s144
      %p153 = scmp.eq.s32.totalorder %s27, 1
      %p154 = por %p152, %p153
      %p155 = scmp.ne.s32.totalorder %s144, %s145
      %p156 = scmp.eq.s32.totalorder %s27, 0
      %p157 = por %p155, %p156
      %p158 = scmp.ne.s32.totalorder %s144, %s145
      %p159 = scmp.eq.s32.totalorder %s28, 1
      %p160 = por %p158, %p159
      %p162 = scmp.ne.s32.totalorder %s145, %s161
      %p163 = scmp.eq.s32.totalorder %s28, 0
      %p164 = por %p162, %p163
      %p165 = scmp.le.s32.totalorder 1, %s22
      %p166 = scmp.lt.s32.totalorder %s22, 3
      %p167 = pnand %p165, %p166
      %p168 = pneg %p167
      // Predicated region
      $region9: #{tpu_custom_call.1} parent=5 // pred_check
        _
      $region10: #{tpu_custom_call.1} parent=5 // pred_check_branch
        %170 = sbr.rel (%p167) target = $region12
      $region11: #{tpu_custom_call.1} parent=5 // pred_region
        %s171 = ssub.s32 %s22, 1
      $region12: #{tpu_custom_call.1} parent=5 // pred_fallthru
        _
      %p172 = scmp.lt.s32.totalorder %s22, 2
      // Predicated region
      $region13: #{tpu_custom_call.1} parent=5 // pred_check
        %p173 = pneg %p172
      $region14: #{tpu_custom_call.1} parent=5 // pred_check_branch
        %175 = sbr.rel (%p173) target = $region16
      $region15: #{tpu_custom_call.1} parent=5 // pred_region
        // Predicated region
        $region17: #{tpu_custom_call.1} parent=15 // pred_check
          %p176 = pneg %p65
        $region18: #{tpu_custom_call.1} parent=15 // pred_check_branch
          %178 = sbr.rel (%p176) target = $region20
        $region19: #{tpu_custom_call.1} parent=15 // pred_region
          %s179 = sand.u32 %s55, 1
          %s180 = scalar_lea.sflag [#allocation6], %s179
          %s181 = sand.u32 %s55, 1
          %s182 = smul.addr %s181, 8
          %s183 = scalar_lea.vmem [#allocation5], %s182
          %s184 = sadd.s32 %s30, %s31
          %s186 = ssub.s32 128, 128
          %187 = vsyncadd %s180, %s186
          %s188 = smul.addr %s29, 4
          %s189 = sadd.s32 %s184, %s188
          %s190 = smul.addr %s189, 32
          %s191 = scalar_lea.hbm %s0, %s190
          %s192 = sshll.u32 %s183, 4
          %s193 = int_to_ptr.vmem [resolvable:$true] %s192
          %198 = dma.hbm_to_vmem [thread:$0]  %s191, 128, %s193, %s180, 32, 32, 2
        $region20: #{tpu_custom_call.1} parent=15 // pred_fallthru
          _
        // Predicated region
        $region21: #{tpu_custom_call.1} parent=15 // pred_check
          %p199 = pneg %p95
        $region22: #{tpu_custom_call.1} parent=15 // pred_check_branch
          %201 = sbr.rel (%p199) target = $region24
        $region23: #{tpu_custom_call.1} parent=15 // pred_region
          %s202 = sand.u32 %s85, 1
          %s203 = scalar_lea.sflag [#allocation9], %s202
          %s204 = sand.u32 %s85, 1
          %s205 = smul.addr %s204, 2
          %s206 = scalar_lea.vmem [#allocation8], %s205
          %s207 = sadd.s32 %s30, %s31
          %s209 = ssub.s32 32, 32
          %210 = vsyncadd %s203, %s209
          %s211 = sadd.s32 %s207, %s29
          %s212 = smul.addr %s211, 32
          %s213 = scalar_lea.hbm %s1, %s212
          %s215 = sshll.u32 %s206, 4
          %s216 = int_to_ptr.vmem [resolvable:$true] %s215
          %218 = dma.hbm_to_vmem [thread:$0]  %s213, 32, %s216, %s203
        $region24: #{tpu_custom_call.1} parent=15 // pred_fallthru
          _
      $region16: #{tpu_custom_call.1} parent=5 // pred_fallthru
        _
      %p219 = scmp.le.s32.totalorder 1, %s22
      %p220 = scmp.lt.s32.totalorder %s22, 3
      %p221 = pnand %p219, %p220
      %p222 = pneg %p221
      // Predicated region
      $region25: #{tpu_custom_call.1} parent=5 // pred_check
        _
      $region26: #{tpu_custom_call.1} parent=5 // pred_check_branch
        %224 = sbr.rel (%p221) target = $region28
      $region27: #{tpu_custom_call.1} parent=5 // pred_region
        %s225 = ssub.s32 %s22, 1
        %s226 = sand.u32 %s58, 1
        %s227 = scalar_lea.sflag [#allocation6], %s226
        %s228 = sand.u32 %s58, 1
        %s229 = smul.addr %s228, 8
        %s230 = scalar_lea.vmem [#allocation5], %s229
        // Predicated region
        $region29: #{tpu_custom_call.1} parent=27 // pred_check
          %p231 = pneg %p71
        $region30: #{tpu_custom_call.1} parent=27 // pred_check_branch
          %233 = sbr.rel (%p231) target = $region32
        $region31: #{tpu_custom_call.1} parent=27 // pred_region
          %234 = dma.done %s227, 128
        $region32: #{tpu_custom_call.1} parent=27 // pred_fallthru
          _
        %s235 = sand.u32 %s88, 1
        %s236 = scalar_lea.sflag [#allocation9], %s235
        %s237 = sand.u32 %s88, 1
        %s238 = smul.addr %s237, 2
        %s239 = scalar_lea.vmem [#allocation8], %s238
        // Predicated region
        $region33: #{tpu_custom_call.1} parent=27 // pred_check
          %p240 = pneg %p101
        $region34: #{tpu_custom_call.1} parent=27 // pred_check_branch
          %242 = sbr.rel (%p240) target = $region36
        $region35: #{tpu_custom_call.1} parent=27 // pred_region
          %243 = dma.done %s236, 32
        $region36: #{tpu_custom_call.1} parent=27 // pred_fallthru
          _
        %s244 = sand.u32 %s58, 1
        %s245 = scalar_lea.sflag [#allocation6], %s244
        %s246 = sand.u32 %s58, 1
        %s247 = smul.addr %s246, 8
        %s248 = scalar_lea.vmem [#allocation5], %s247
        %p249 = pneg %p71
        %p250 = pneg %p68
        %s251 = sand.u32 %s88, 1
        %s252 = scalar_lea.sflag [#allocation9], %s251
        %s253 = sand.u32 %s88, 1
        %s254 = smul.addr %s253, 2
        %s255 = scalar_lea.vmem [#allocation8], %s254
        %p256 = pneg %p101
        %p257 = pneg %p98
        %p258 = pneg %p129
        %p259 = pneg %p126
        %s260 = sand.u32 %s116, 1
        %s261 = scalar_lea.sflag [#allocation7], %s260
        %s262 = sand.u32 %s116, 1
        %s263 = smul.addr %s262, 4
        %s264 = scalar_lea.vmem [#allocation10], %s263
        %p265 = pneg %p157
        %p266 = pneg %p154
        %s267 = sand.u32 %s144, 1
        %s268 = scalar_lea.sflag [#allocation12], %s267
        %s269 = sand.u32 %s144, 1
        %s270 = smul.addr %s269, 4
        %s271 = scalar_lea.vmem [#allocation11], %s270
        %s272 = sadd.s32 %s33, %s34
        %s273 = sadd.s32 %s33, %s34
        %p274 = scmp.eq.s32.totalorder %s34, 0
        // Predicated region
        $region37: #{tpu_custom_call.1} parent=27 // pred_check
          %p275 = pneg %p274
        $region38: #{tpu_custom_call.1} parent=27 // pred_check_branch
          %277 = sbr.rel (%p275) target = $region40
        $region39: #{tpu_custom_call.1} parent=27 // pred_region
          %278 = vst [vmem:[#allocation2] sm:$0x3] 0.0
          %279 = vst [vmem:[#allocation2 + $0x2] sm:$0x3] 0.0
          %280 = vst [vmem:[#allocation2 + $0x4] sm:$0x3] 0.0
          %281 = vst [vmem:[#allocation2 + $0x6] sm:$0x3] 0.0
          %282 = vst [vmem:[#allocation3] sm:$0x3] 0.0
          %283 = vst [vmem:[#allocation3 + $0x2] sm:$0x3] 0.0
          %284 = vst [vmem:[#allocation3 + $0x4] sm:$0x3] 0.0
          %285 = vst [vmem:[#allocation3 + $0x6] sm:$0x3] 0.0
          %286 = vst [vmem:[#allocation4] sm:$0x3] 0.0
        $region40: #{tpu_custom_call.1} parent=27 // pred_fallthru
          _
        %v287 = vld [vmem:[%s230] sm:$0x3]
        %v288 = vld [vmem:[%s230 + $0x2] sm:$0x3]
        %v289 = vld [vmem:[%s230 + $0x4] sm:$0x3]
        %v290 = vld [vmem:[%s230 + $0x6] sm:$0x3]
        %v291 = vld [vmem:[%s239] sm:$0x3]
        %v292 = vmul.f32 %v287, 0.5
        %v293 = vmul.f32 %v288, 0.5
        %v294 = vmul.f32 %v289, 0.5
        %v295 = vmul.f32 %v290, 0.5
        %v296 = vtanh.pop %v292
        %v297 = vtanh.pop %v293
        %v298 = vtanh.pop %v294
        %v299 = vtanh.pop %v295
        %v300 = vmul.f32 %v296, 0.5
        %v301 = vmul.f32 %v297, 0.5
        %v302 = vmul.f32 %v298, 0.5
        %v303 = vmul.f32 %v299, 0.5
        %v304 = vadd.f32 %v300, 0.5
        %v305 = vadd.f32 %v301, 0.5
        %v306 = vadd.f32 %v302, 0.5
        %v307 = vadd.f32 %v303, 0.5
        %v308 = vmul.f32 %v304, %v291
        %v309 = vmul.f32 %v305, %v291
        %v310 = vmul.f32 %v306, %v291
        %v311 = vmul.f32 %v307, %v291
        %v312 = vld [vmem:[#allocation2] sm:$0x3]
        %v313 = vld [vmem:[#allocation2 + $0x2] sm:$0x3]
        %v314 = vld [vmem:[#allocation2 + $0x4] sm:$0x3]
        %v315 = vld [vmem:[#allocation2 + $0x6] sm:$0x3]
        %v316 = vadd.f32 %v312, %v308
        %v317 = vadd.f32 %v313, %v309
        %v318 = vadd.f32 %v314, %v310
        %v319 = vadd.f32 %v315, %v311
        %320 = vst [vmem:[#allocation2] sm:$0x3] %v316
        %321 = vst [vmem:[#allocation2 + $0x2] sm:$0x3] %v317
        %322 = vst [vmem:[#allocation2 + $0x4] sm:$0x3] %v318
        %323 = vst [vmem:[#allocation2 + $0x6] sm:$0x3] %v319
        %v324 = vld [vmem:[#allocation3] sm:$0x3]
        %v325 = vld [vmem:[#allocation3 + $0x2] sm:$0x3]
        %v326 = vld [vmem:[#allocation3 + $0x4] sm:$0x3]
        %v327 = vld [vmem:[#allocation3 + $0x6] sm:$0x3]
        %v328 = vadd.f32 %v324, %v304
        %v329 = vadd.f32 %v325, %v305
        %v330 = vadd.f32 %v326, %v306
        %v331 = vadd.f32 %v327, %v307
        %332 = vst [vmem:[#allocation3] sm:$0x3] %v328
        %333 = vst [vmem:[#allocation3 + $0x2] sm:$0x3] %v329
        %334 = vst [vmem:[#allocation3 + $0x4] sm:$0x3] %v330
        %335 = vst [vmem:[#allocation3 + $0x6] sm:$0x3] %v331
        %v336 = vld [vmem:[#allocation4] sm:$0x3]
        %v337 = vadd.f32 %v336, %v291
        %338 = vst [vmem:[#allocation4] sm:$0x3] %v337
        // Predicated region
        $region41: #{tpu_custom_call.1} parent=27 // pred_check
          %p339 = pneg %p274
        $region42: #{tpu_custom_call.1} parent=27 // pred_check_branch
          %341 = sbr.rel (%p339) target = $region44
        $region43: #{tpu_custom_call.1} parent=27 // pred_region
          %v342 = vld [vmem:[#allocation4] sm:$0x3]
          %vm343 = vcmask 1041408
          %v344 = vsel %vm343, %v342, 0.0
          %v345 = vrot.slane %v344, 4
          %v346 = vadd.f32 %v344, %v345
          %v347 = vrot.slane %v346, 2
          %v348 = vadd.f32 %v346, %v347
          %v349 = vrot.slane %v348, 1
          %v350 = vadd.f32 %v348, %v349
          %v351 = vld [vmem:[#allocation2] sm:$0x3]
          %v352 = vld [vmem:[#allocation2 + $0x2] sm:$0x3]
          %v353 = vld [vmem:[#allocation2 + $0x4] sm:$0x3]
          %v354 = vld [vmem:[#allocation2 + $0x6] sm:$0x3]
          %v355 = vsel %vm343, %v351, 0.0
          %v356 = vrot.slane %v355, 4
          %v357 = vadd.f32 %v355, %v356
          %v358 = vrot.slane %v357, 2
          %v359 = vadd.f32 %v357, %v358
          %v360 = vrot.slane %v359, 1
          %v361 = vadd.f32 %v359, %v360
          %v362 = vsel %vm343, %v352, 0.0
          %v363 = vrot.slane %v362, 4
          %v364 = vadd.f32 %v362, %v363
          %v365 = vrot.slane %v364, 2
          %v366 = vadd.f32 %v364, %v365
          %v367 = vrot.slane %v366, 1
          %v368 = vadd.f32 %v366, %v367
          %v369 = vsel %vm343, %v353, 0.0
          %v370 = vrot.slane %v369, 4
          %v371 = vadd.f32 %v369, %v370
          %v372 = vrot.slane %v371, 2
          %v373 = vadd.f32 %v371, %v372
          %v374 = vrot.slane %v373, 1
          %v375 = vadd.f32 %v373, %v374
          %v376 = vsel %vm343, %v354, 0.0
          %v377 = vrot.slane %v376, 4
          %v378 = vadd.f32 %v376, %v377
          %v379 = vrot.slane %v378, 2
          %v380 = vadd.f32 %v378, %v379
          %v381 = vrot.slane %v380, 1
          %v382 = vadd.f32 %v380, %v381
          %vm387 = vcmask 1041409
          %v388 = vsel %vm387, %v368, %v361
          %vm389 = vcmask 1042434
          %v390 = vsel %vm389, %v375, %v388
          %vm391 = vcmask 1043459
          %v392 = vsel %vm391, %v382, %v390
          %394 = vst [vmem:[%s264] sm:$0xf] %v392
          %v395 = vld [vmem:[#allocation3] sm:$0x3]
          %v396 = vld [vmem:[#allocation3 + $0x2] sm:$0x3]
          %v397 = vld [vmem:[#allocation3 + $0x4] sm:$0x3]
          %v398 = vld [vmem:[#allocation3 + $0x6] sm:$0x3]
          %v399 = vsel %vm343, %v395, 0.0
          %v400 = vrot.slane %v399, 4
          %v401 = vadd.f32 %v399, %v400
          %v402 = vrot.slane %v401, 2
          %v403 = vadd.f32 %v401, %v402
          %v404 = vrot.slane %v403, 1
          %v405 = vadd.f32 %v403, %v404
          %v406 = vsel %vm343, %v396, 0.0
          %v407 = vrot.slane %v406, 4
          %v408 = vadd.f32 %v406, %v407
          %v409 = vrot.slane %v408, 2
          %v410 = vadd.f32 %v408, %v409
          %v411 = vrot.slane %v410, 1
          %v412 = vadd.f32 %v410, %v411
          %v413 = vsel %vm343, %v397, 0.0
          %v414 = vrot.slane %v413, 4
          %v415 = vadd.f32 %v413, %v414
          %v416 = vrot.slane %v415, 2
          %v417 = vadd.f32 %v415, %v416
          %v418 = vrot.slane %v417, 1
          %v419 = vadd.f32 %v417, %v418
          %v420 = vsel %vm343, %v398, 0.0
          %v421 = vrot.slane %v420, 4
          %v422 = vadd.f32 %v420, %v421
          %v423 = vrot.slane %v422, 2
          %v424 = vadd.f32 %v422, %v423
          %v425 = vrot.slane %v424, 1
          %v426 = vadd.f32 %v424, %v425
          %v427 = vadd.f32 %v405, %v350
          %v428 = vadd.f32 %v412, %v350
          %v429 = vadd.f32 %v419, %v350
          %v430 = vadd.f32 %v426, %v350
          %v435 = vrot.slane %v428, 7
          %v436 = vsel %vm387, %v435, %v427
          %v437 = vrot.slane %v429, 6
          %v438 = vsel %vm389, %v437, %v436
          %v439 = vrot.slane %v430, 5
          %v440 = vsel %vm391, %v439, %v438
          %442 = vst [vmem:[%s271] sm:$0xf] %v440
        $region44: #{tpu_custom_call.1} parent=27 // pred_fallthru
          _
        %s443 = sand.u32 %s116, 1
        %s444 = scalar_lea.sflag [#allocation7], %s443
        %s445 = sand.u32 %s116, 1
        %s446 = smul.addr %s445, 4
        %s447 = scalar_lea.vmem [#allocation10], %s446
        %s448 = sand.u32 %s144, 1
        %s449 = scalar_lea.sflag [#allocation12], %s448
        %s450 = sand.u32 %s144, 1
        %s451 = smul.addr %s450, 4
        %s452 = scalar_lea.vmem [#allocation11], %s451
        // Predicated region
        $region45: #{tpu_custom_call.1} parent=27 // pred_check
          %p453 = pneg %p126
        $region46: #{tpu_custom_call.1} parent=27 // pred_check_branch
          %455 = sbr.rel (%p453) target = $region48
        $region47: #{tpu_custom_call.1} parent=27 // pred_region
          %s457 = ssub.s32 64, 64
          %458 = vsyncadd %s444, %s457
          %s459 = sadd.s32 %s33, %s32
          %s460 = smul.addr %s459, 64
          %s461 = scalar_lea.hbm %s2, %s460
          %s463 = sshll.u32 %s447, 4
          %s464 = int_to_ptr.vmem [resolvable:$true] %s463
          %466 = dma.vmem_to_hbm [thread:$0]  %s464, 64, %s461, %s444
        $region48: #{tpu_custom_call.1} parent=27 // pred_fallthru
          _
        // Predicated region
        $region49: #{tpu_custom_call.1} parent=27 // pred_check
          %p467 = pneg %p154
        $region50: #{tpu_custom_call.1} parent=27 // pred_check_branch
          %469 = sbr.rel (%p467) target = $region52
        $region51: #{tpu_custom_call.1} parent=27 // pred_region
          %s471 = ssub.s32 64, 64
          %472 = vsyncadd %s449, %s471
          %s473 = sadd.s32 %s33, %s32
          %s474 = smul.addr %s473, 64
          %s475 = scalar_lea.hbm %s3, %s474
          %s477 = sshll.u32 %s452, 4
          %s478 = int_to_ptr.vmem [resolvable:$true] %s477
          %480 = dma.vmem_to_hbm [thread:$0]  %s478, 64, %s475, %s449
        $region52: #{tpu_custom_call.1} parent=27 // pred_fallthru
          _
      $region28: #{tpu_custom_call.1} parent=5 // pred_fallthru
        _
      %p481 = scmp.le.s32.totalorder 2, %s22
      // Predicated region
      $region53: #{tpu_custom_call.1} parent=5 // pred_check
        %p482 = pneg %p481
      $region54: #{tpu_custom_call.1} parent=5 // pred_check_branch
        %484 = sbr.rel (%p482) target = $region56
      $region55: #{tpu_custom_call.1} parent=5 // pred_region
        %s485 = ssub.s32 %s22, 2
        // Predicated region
        $region57: #{tpu_custom_call.1} parent=55 // pred_check
          %p486 = pneg %p132
        $region58: #{tpu_custom_call.1} parent=55 // pred_check_branch
          %488 = sbr.rel (%p486) target = $region60
        $region59: #{tpu_custom_call.1} parent=55 // pred_region
          %s489 = sand.u32 %s117, 1
          %s490 = scalar_lea.sflag [#allocation7], %s489
          %s491 = sand.u32 %s117, 1
          %s492 = smul.addr %s491, 4
          %s493 = scalar_lea.vmem [#allocation10], %s492
          %494 = dma.done %s490, 64
        $region60: #{tpu_custom_call.1} parent=55 // pred_fallthru
          _
        // Predicated region
        $region61: #{tpu_custom_call.1} parent=55 // pred_check
          %p495 = pneg %p160
        $region62: #{tpu_custom_call.1} parent=55 // pred_check_branch
          %497 = sbr.rel (%p495) target = $region64
        $region63: #{tpu_custom_call.1} parent=55 // pred_region
          %s498 = sand.u32 %s145, 1
          %s499 = scalar_lea.sflag [#allocation12], %s498
          %s500 = sand.u32 %s145, 1
          %s501 = smul.addr %s500, 4
          %s502 = scalar_lea.vmem [#allocation11], %s501
          %503 = dma.done %s499, 64
        $region64: #{tpu_custom_call.1} parent=55 // pred_fallthru
          _
      $region56: #{tpu_custom_call.1} parent=5 // pred_fallthru
        _
    $region6: #{tpu_custom_call.1} parent=1 // loop_footer
      %s26 = sadd.s32 1, %s22
    $region7: #{tpu_custom_call.1} parent=1 // loop_footer_branch
      %21 = sbr.rel target = $region3
    $region8: #{tpu_custom_call.1} parent=1 // loop_exit
      _
    %504 = vsyncpa [#allocation6], 1
    %s505 = scalar_lea.sflag [#allocation6], 1
    %506 = vsyncpa %s505, 1
    %507 = vsyncpa [#allocation9], 1
    %s508 = scalar_lea.sflag [#allocation9], 1
    %509 = vsyncpa %s508, 1
    %510 = vsyncpa [#allocation7], 1
    %s511 = scalar_lea.sflag [#allocation7], 1
    %512 = vsyncpa %s511, 1
    %513 = vsyncpa [#allocation12], 1
    %s514 = scalar_lea.sflag [#allocation12], 1
    %515 = vsyncpa %s514, 1

</llo_original>
